<compile_context>
chip_gen: v7x
topology: tpu7x:2x2x1
jax: 0.10.0
libtpu: 0.0.40
codegen_flags: <defaults>
</compile_context>

<pallas_src>
import functools

import jax
import jax.numpy as jnp
import numpy as np
from jax.experimental import pallas as pl
from jax.experimental.pallas import tpu as pltpu


def _round_up(x, m):
    return ((x + m - 1) // m) * m


# ----------------------------- Pallas kernel -------------------------------
def _gate_conv_kernel(x_ref, h_ref, w_ref, b_ref, o_ref, acc_ref, *,
                      k_t, s_t, tile_t, f_pad, cp):
    """One (batch, time-tile) block of GateConv2d.

    x_ref:   (1, tile_t, f_pad, L)   main phase-rows (L = s_t*k_f*c_in lanes)
    h_ref:   (1, g, f_pad, L)        next g phase-rows (time halo)
    w_ref:   (k_t, L, 2*cp)          per-time-tap weights (phase-embedded);
                                     outs in lanes [0,cp), gate in [cp,2cp)
    b_ref:   (1, 2*cp)               bias (f32), same lane layout
    o_ref:   (1, tile_t, f_pad, cp)  gated output tile (cp = pad128(C_out))
    acc_ref: (tile_t*f_pad, 2*cp)    f32 VMEM accumulator scratch
    """
    m = tile_t * f_pad
    L = x_ref.shape[-1]
    for dt in range(k_t):
        rt = dt // s_t                       # phase-row offset of this time tap
        nm = (tile_t - rt) * f_pad
        lhs = x_ref[0, rt:tile_t].reshape(nm, L)       # free reshape (f_pad%8==0)
        part = jnp.dot(lhs, w_ref[dt], preferred_element_type=jnp.float32)
        if dt == 0:                                    # rt == 0 -> full init
            acc_ref[...] = part
        else:
            acc_ref[0:nm, :] += part
        if rt > 0:                                     # rows fed by the halo block
            halo = h_ref[0, 0:rt].reshape(rt * f_pad, L)
            acc_ref[nm:m, :] += jnp.dot(halo, w_ref[dt],
                                        preferred_element_type=jnp.float32)
    acc = acc_ref[...] + b_ref[...]
    gated = acc[:, :cp] * jax.nn.sigmoid(acc[:, cp:])  # 128-lane-aligned GLU split
    o_ref[0] = gated.astype(o_ref.dtype).reshape(tile_t, f_pad, cp)


# ------------------------------ JAX wrapper ----------------------------------
@functools.partial(jax.jit,
                   static_argnames=("kernel_size", "stride", "tile_t",
                                    "compute_dtype"))
def gate_conv2d(inputs, weight, bias, kernel_size, stride, *,
                tile_t=64, compute_dtype=jnp.bfloat16):
    """inputs: (B, C_in, T, F) NCHW (or (B, T, F) -> unsqueezed to C=1).
       weight: (2*C_out, C_in, k_t, k_f)  (PyTorch Conv2d OIHW layout)
       bias:   (2*C_out,)
       returns (B, C_out, T_out, F_out) NCHW."""
    if inputs.ndim == 3:
        inputs = inputs[:, None]
    k_t, k_f = kernel_size
    s_t, s_f = stride
    B, c_in, T, F = inputs.shape
    two_c_out = weight.shape[0]
    c_out = two_c_out // 2
    out_dtype = inputs.dtype

    # causal zero pad along time (ConstantPad2d((0, 0, k_t-1, 0)))
    x = inputs
    if k_t > 1:
        x = jnp.pad(x, ((0, 0), (0, 0), (k_t - 1, 0), (0, 0)))
    t_cp = x.shape[2]
    t_out = (t_cp - k_t) // s_t + 1
    f_out = (F - k_f) // s_f + 1

    f_pad = _round_up(f_out, 8)              # sublane-aligned freq axis
    halo_r = (k_t - 1) // s_t                # extra phase-rows needed per tile
    g = _round_up(max(halo_r, 1), 8)         # halo-block granule (divides tile_t)

    tile_t = max(1, min(tile_t, t_out))
    tile_t = _round_up(tile_t, g)
    n_t = pl.cdiv(t_out, tile_t)
    if B * n_t < 2 and t_out > g:
        # split time so the v7x second TensorCore gets work ("parallel" grid)
        tile_t = _round_up(pl.cdiv(t_out, 2), g)
        n_t = pl.cdiv(t_out, tile_t)

    r_pad = n_t * tile_t + g                 # phase-rows incl. last tile's halo
    t_need = r_pad * s_t
    f_need = (f_pad - 1) * s_f + k_f

    x = x[:, :, :min(t_cp, t_need), :min(F, f_need)]
    x = jnp.pad(x, ((0, 0), (0, 0),
                    (0, t_need - x.shape[2]), (0, f_need - x.shape[3])))

    # frequency im2col + time stride-phase fold into the lane axis:
    #   xr[b, r, fo, (p*k_f + df)*c_in + c] = x[b, c, r*s_t + p, fo*s_f + df]
    L = s_t * k_f * c_in
    cols = [jax.lax.slice_in_dim(x, df, df + (f_pad - 1) * s_f + 1,
                                 stride=s_f, axis=3)
            for df in range(k_f)]                         # (B,C,t_need,f_pad) each
    xs = jnp.stack(cols, axis=2)                          # (B,C,k_f,t_need,f_pad)
    xs = xs.reshape(B, c_in, k_f, r_pad, s_t, f_pad)
    xr = jnp.transpose(xs, (0, 3, 5, 4, 2, 1)).reshape(B, r_pad, f_pad, L)
    xr = xr.astype(compute_dtype)

    # weights: OIHW -> (k_t, L, 2*cp); tap dt lives in the phase-(dt % s_t) lane
    # group, other lanes zero -> the kernel never lane-slices its LHS.
    cp = _round_up(c_out, 128)
    n2 = 2 * cp
    wt = jnp.transpose(weight, (2, 3, 1, 0))              # (k_t,k_f,c_in,2*c_out)
    w_o = jnp.pad(wt[..., :c_out], ((0, 0),) * 3 + ((0, cp - c_out),))
    w_g = jnp.pad(wt[..., c_out:], ((0, 0),) * 3 + ((0, cp - c_out),))
    wt2 = jnp.concatenate([w_o, w_g], axis=-1)            # (k_t,k_f,c_in,n2)
    w6 = jnp.zeros((k_t, s_t, k_f, c_in, n2), wt2.dtype)
    w6 = w6.at[jnp.arange(k_t), jnp.arange(k_t) % s_t].set(wt2)
    w2 = w6.reshape(k_t, L, n2).astype(compute_dtype)

    b_o = jnp.pad(bias[:c_out].astype(jnp.float32), (0, cp - c_out))
    b_g = jnp.pad(bias[c_out:].astype(jnp.float32), (0, cp - c_out))
    b2 = jnp.concatenate([b_o, b_g]).reshape(1, n2)

    kernel = functools.partial(
        _gate_conv_kernel, k_t=k_t, s_t=s_t, tile_t=tile_t, f_pad=f_pad, cp=cp)

    m_tile = tile_t * f_pad
    n_blocks = B * n_t
    it = jnp.dtype(compute_dtype).itemsize
    ot = jnp.dtype(out_dtype).itemsize
    cost = pl.CostEstimate(
        flops=2 * n_blocks * k_t * m_tile * L * n2 + 4 * n_blocks * m_tile * n2,
        transcendentals=n_blocks * m_tile * cp,
        bytes_accessed=(xr.size + w2.size) * it + b2.size * 4
                       + n_blocks * m_tile * cp * ot,
    )
    # VMEM budget derived from the actual (double-buffered) blocks + scratch,
    # with headroom; portable to v7x's 64 MiB VMEM.
    vmem_needed = (2 * m_tile * L * it           # main input block (x2 buffers)
                   + 2 * g * f_pad * L * it      # halo block
                   + 2 * k_t * L * n2 * it       # weights
                   + 2 * n2 * 4                  # bias
                   + 2 * m_tile * cp * ot        # output block
                   + m_tile * n2 * 4)            # f32 accumulator scratch
    vmem_limit = int(min(max(3 * vmem_needed, 16 * 1024 * 1024),
                         64 * 1024 * 1024))

    out = pl.pallas_call(
        kernel,
        out_shape=jax.ShapeDtypeStruct((B, n_t * tile_t, f_pad, cp), out_dtype),
        grid=(B, n_t),
        in_specs=[
            # main phase-rows of this time tile
            pl.BlockSpec((1, tile_t, f_pad, L), lambda b, i: (b, i, 0, 0)),
            # time halo: the next g phase-rows (no jnp.stack / extra HBM pass)
            pl.BlockSpec((1, g, f_pad, L),
                         lambda b, i: (b, (i + 1) * (tile_t // g), 0, 0)),
            pl.BlockSpec((k_t, L, n2), lambda b, i: (0, 0, 0)),   # resident
            pl.BlockSpec((1, n2), lambda b, i: (0, 0)),           # resident
        ],
        out_specs=pl.BlockSpec((1, tile_t, f_pad, cp),
                               lambda b, i: (b, i, 0, 0)),
        scratch_shapes=[pltpu.VMEM((m_tile, n2), jnp.float32)],
        compiler_params=pltpu.CompilerParams(
            dimension_semantics=("parallel", "parallel"),
            vmem_limit_bytes=vmem_limit,
        ),
        cost_estimate=cost,
    )(xr, xr, w2, b2)

    # (B, n_t*tile_t, f_pad, cp) -> (B, C_out, T_out, F_out)
    out = out[:, :t_out, :f_out, :c_out]
    # TODO(synk): downstream consumers could take this lane-padded NHWC layout
    # directly and skip the final NCHW transpose (one extra HBM pass on output).
    return jnp.transpose(out, (0, 3, 1, 2))


# ------------------------------- reference ----------------------------------
def gate_conv2d_ref(inputs, weight, bias, kernel_size, stride):
    """Pure-JAX reference using lax.conv_general_dilated (NCHW)."""
    if inputs.ndim == 3:
        inputs = inputs[:, None]
    k_t, _ = kernel_size
    if k_t > 1:
        inputs = jnp.pad(inputs, ((0, 0), (0, 0), (k_t - 1, 0), (0, 0)))
    y = jax.lax.conv_general_dilated(
        inputs.astype(jnp.float32),
        weight.astype(jnp.float32),
        window_strides=stride,
        padding="VALID",
        dimension_numbers=("NCHW", "OIHW", "NCHW"),
    ) + bias.reshape(1, -1, 1, 1)
    c_out = weight.shape[0] // 2
    outs, gate = y[:, :c_out], y[:, c_out:]
    return outs * jax.nn.sigmoid(gate)


# --------------------------------- main --------------------------------------
if __name__ == "__main__":
    root_key = jax.random.PRNGKey(0)

    def _run_case(case_id, B, c_in, c_out, T, F, ksz, strd, tile_t,
                  compute_dtype, atol, rtol, three_d=False):
        key = jax.random.fold_in(root_key, case_id)
        kx, kw, kb = jax.random.split(key, 3)
        if three_d:
            assert c_in == 1
            x = jax.random.normal(kx, (B, T, F), dtype=jnp.float32)
        else:
            x = jax.random.normal(kx, (B, c_in, T, F), dtype=jnp.float32)
        w = 0.1 * jax.random.normal(
            kw, (2 * c_out, c_in, ksz[0], ksz[1]), dtype=jnp.float32)
        b = 0.1 * jax.random.normal(kb, (2 * c_out,), dtype=jnp.float32)

        out = jax.block_until_ready(
            gate_conv2d(x, w, b, kernel_size=ksz, stride=strd,
                        tile_t=tile_t, compute_dtype=compute_dtype))
        ref = jax.block_until_ready(gate_conv2d_ref(x, w, b, ksz, strd))
        assert out.shape == ref.shape, (case_id, out.shape, ref.shape)
        np.testing.assert_allclose(np.asarray(out), np.asarray(ref),
                                   atol=atol, rtol=rtol)

    # canonical EaBNet GateConv2d config: kernel (2,3), stride (1,2) -- f32 path
    _run_case(0, B=2, c_in=4, c_out=6, T=8, F=16, ksz=(2, 3), strd=(1, 2),
              tile_t=64, compute_dtype=jnp.float32, atol=1e-5, rtol=1e-5)
    # same config, default bf16 MXU operands (f32 accumulate) -> looser tol
    _run_case(1, B=2, c_in=4, c_out=6, T=16, F=16, ksz=(2, 3), strd=(1, 2),
              tile_t=64, compute_dtype=jnp.bfloat16, atol=5e-2, rtol=5e-2)
    # generality: time/freq strides > 1, k_t > s_t halo, F/T padding
    _run_case(2, B=1, c_in=3, c_out=5, T=10, F=13, ksz=(3, 4), strd=(2, 2),
              tile_t=3, compute_dtype=jnp.float32, atol=1e-5, rtol=1e-5)
    # 3-D input (unsqueeze path) with k_t == 1 (no causal pad, halo unused)
    _run_case(3, B=2, c_in=1, c_out=4, T=12, F=16, ksz=(1, 3), strd=(1, 2),
              tile_t=64, compute_dtype=jnp.float32, atol=1e-5, rtol=1e-5,
              three_d=True)

    print("KERNEL_OK")
</pallas_src>

<mosaic_0001>
module attributes {stable_mosaic.version = 11 : i64} {
  func.func @_gate_conv_kernel(%arg0: i32, %arg1: i32, %arg2: memref<1x8x8x12xf32, #tpu.memory_space<vmem>>, %arg3: memref<1x8x8x12xf32, #tpu.memory_space<vmem>>, %arg4: memref<2x12x256xf32, #tpu.memory_space<vmem>>, %arg5: memref<1x256xf32, #tpu.memory_space<vmem>>, %arg6: memref<1x8x8x128xf32, #tpu.memory_space<vmem>>, %arg7: memref<64x256xf32, #tpu.memory_space<vmem>>) attributes {dimension_semantics = [#tpu.dimension_semantics<parallel>, #tpu.dimension_semantics<parallel>], iteration_bounds = array<i64: 2, 1>, scalar_prefetch = 0 : i64, scratch_operands = 1 : i64, tpu.core_type = #tpu.core_type<tc>, window_params = [{transform_indices = @transform_0, window_bounds = array<i64: 1, 8, 8, 12>}, {transform_indices = @transform_1, window_bounds = array<i64: 1, 8, 8, 12>}, {pipeline_mode = #tpu.pipeline_mode<synchronous>, transform_indices = @transform_2, window_bounds = array<i64: 2, 12, 256>}, {pipeline_mode = #tpu.pipeline_mode<synchronous>, transform_indices = @transform_3, window_bounds = array<i64: 1, 256>}, {transform_indices = @transform_4, window_bounds = array<i64: 1, 8, 8, 128>}]} {
    %c0 = arith.constant 0 : index
    %c0_0 = arith.constant 0 : index
    %c0_1 = arith.constant 0 : index
    %c0_2 = arith.constant 0 : index
    %0 = vector.load %arg2[%c0, %c0_0, %c0_1, %c0_2] : memref<1x8x8x12xf32, #tpu.memory_space<vmem>>, vector<1x8x8x12xf32>
    %1 = vector.shape_cast %0 : vector<1x8x8x12xf32> to vector<8x8x12xf32>
    %2 = vector.shape_cast %1 : vector<8x8x12xf32> to vector<64x12xf32>
    %c0_3 = arith.constant 0 : index
    %c0_4 = arith.constant 0 : index
    %c0_5 = arith.constant 0 : index
    %3 = vector.load %arg4[%c0_3, %c0_4, %c0_5] : memref<2x12x256xf32, #tpu.memory_space<vmem>>, vector<1x12x256xf32>
    %4 = vector.shape_cast %3 : vector<1x12x256xf32> to vector<12x256xf32>
    %cst = arith.constant dense<0.000000e+00> : vector<64x256xf32>
    %5 = tpu.matmul %2, %4, %cst {dimension_numbers = #tpu.dot_dimension_numbers<[1], [0], [0], [1], [0, 0, 1, 1], [], []>} : vector<64x12xf32>, vector<12x256xf32>, vector<64x256xf32> -> vector<64x256xf32>
    %c0_6 = arith.constant 0 : index
    %c0_7 = arith.constant 0 : index
    %6 = vector.load %arg7[%c0_6, %c0_7] : memref<64x256xf32, #tpu.memory_space<vmem>>, vector<64x256xf32>
    tpu.vector_store %arg7[%c0_6, %c0_7], %5 {strides = array<i32>} : memref<64x256xf32, #tpu.memory_space<vmem>>, vector<64x256xf32>,
    %c0_8 = arith.constant 0 : index
    %c1 = arith.constant 1 : index
    %c0_9 = arith.constant 0 : index
    %c0_10 = arith.constant 0 : index
    %7 = vector.load %arg2[%c0_8, %c1, %c0_9, %c0_10] : memref<1x8x8x12xf32, #tpu.memory_space<vmem>>, vector<1x7x8x12xf32>
    %8 = vector.shape_cast %7 : vector<1x7x8x12xf32> to vector<7x8x12xf32>
    %9 = vector.shape_cast %8 : vector<7x8x12xf32> to vector<56x12xf32>
    %c1_11 = arith.constant 1 : index
    %c0_12 = arith.constant 0 : index
    %c0_13 = arith.constant 0 : index
    %10 = vector.load %arg4[%c1_11, %c0_12, %c0_13] : memref<2x12x256xf32, #tpu.memory_space<vmem>>, vector<1x12x256xf32>
    %11 = vector.shape_cast %10 : vector<1x12x256xf32> to vector<12x256xf32>
    %cst_14 = arith.constant dense<0.000000e+00> : vector<56x256xf32>
    %12 = tpu.matmul %9, %11, %cst_14 {dimension_numbers = #tpu.dot_dimension_numbers<[1], [0], [0], [1], [0, 0, 1, 1], [], []>} : vector<56x12xf32>, vector<12x256xf32>, vector<56x256xf32> -> vector<56x256xf32>
    %c0_15 = arith.constant 0 : index
    %c0_16 = arith.constant 0 : index
    %13 = vector.load %arg7[%c0_15, %c0_16] : memref<64x256xf32, #tpu.memory_space<vmem>>, vector<56x256xf32>
    %14 = arith.addf %13, %12 : vector<56x256xf32>
    %c0_17 = arith.constant 0 : index
    %c0_18 = arith.constant 0 : index
    %15 = vector.load %arg7[%c0_17, %c0_18] : memref<64x256xf32, #tpu.memory_space<vmem>>, vector<56x256xf32>
    tpu.vector_store %arg7[%c0_17, %c0_18], %14 {strides = array<i32>} : memref<64x256xf32, #tpu.memory_space<vmem>>, vector<56x256xf32>,
    %c0_19 = arith.constant 0 : index
    %c0_20 = arith.constant 0 : index
    %c0_21 = arith.constant 0 : index
    %c0_22 = arith.constant 0 : index
    %16 = vector.load %arg3[%c0_19, %c0_20, %c0_21, %c0_22] : memref<1x8x8x12xf32, #tpu.memory_space<vmem>>, vector<1x1x8x12xf32>
    %17 = vector.shape_cast %16 : vector<1x1x8x12xf32> to vector<1x8x12xf32>
    %18 = vector.shape_cast %17 : vector<1x8x12xf32> to vector<8x12xf32>
    %c56 = arith.constant 56 : index
    %c0_23 = arith.constant 0 : index
    %19 = vector.load %arg7[%c56, %c0_23] : memref<64x256xf32, #tpu.memory_space<vmem>>, vector<8x256xf32>
    %c1_24 = arith.constant 1 : index
    %c0_25 = arith.constant 0 : index
    %c0_26 = arith.constant 0 : index
    %20 = vector.load %arg4[%c1_24, %c0_25, %c0_26] : memref<2x12x256xf32, #tpu.memory_space<vmem>>, vector<1x12x256xf32>
    %21 = vector.shape_cast %20 : vector<1x12x256xf32> to vector<12x256xf32>
    %cst_27 = arith.constant dense<0.000000e+00> : vector<8x256xf32>
    %22 = tpu.matmul %18, %21, %cst_27 {dimension_numbers = #tpu.dot_dimension_numbers<[1], [0], [0], [1], [0, 0, 1, 1], [], []>} : vector<8x12xf32>, vector<12x256xf32>, vector<8x256xf32> -> vector<8x256xf32>
    %23 = arith.addf %19, %22 : vector<8x256xf32>
    %c56_28 = arith.constant 56 : index
    %c0_29 = arith.constant 0 : index
    %24 = vector.load %arg7[%c56_28, %c0_29] : memref<64x256xf32, #tpu.memory_space<vmem>>, vector<8x256xf32>
    tpu.vector_store %arg7[%c56_28, %c0_29], %23 {strides = array<i32>} : memref<64x256xf32, #tpu.memory_space<vmem>>, vector<8x256xf32>,
    %c0_30 = arith.constant 0 : index
    %c0_31 = arith.constant 0 : index
    %25 = vector.load %arg7[%c0_30, %c0_31] : memref<64x256xf32, #tpu.memory_space<vmem>>, vector<64x256xf32>
    %c0_32 = arith.constant 0 : index
    %c0_33 = arith.constant 0 : index
    %26 = vector.load %arg5[%c0_32, %c0_33] : memref<1x256xf32, #tpu.memory_space<vmem>>, vector<1x256xf32>
    %27 = vector.broadcast %26 : vector<1x256xf32> to vector<64x256xf32>
    %28 = arith.addf %25, %27 : vector<64x256xf32>
    %29 = vector.extract_strided_slice %28 {offsets = [0, 0], sizes = [64, 128], strides = [1, 1]} : vector<64x256xf32> to vector<64x128xf32>
    %30 = vector.extract_strided_slice %28 {offsets = [0, 128], sizes = [64, 128], strides = [1, 1]} : vector<64x256xf32> to vector<64x128xf32>
    %31 = arith.negf %30 : vector<64x128xf32>
    %32 = math.exp %31 : vector<64x128xf32>
    %cst_34 = arith.constant 1.000000e+00 : f32
    %33 = vector.broadcast %cst_34 : f32 to vector<64x128xf32>
    %34 = arith.addf %33, %32 : vector<64x128xf32>
    %35 = arith.divf %33, %34 : vector<64x128xf32>
    %36 = arith.mulf %29, %35 : vector<64x128xf32>
    %37 = vector.shape_cast %36 : vector<64x128xf32> to vector<8x8x128xf32>
    %c0_35 = arith.constant 0 : index
    %c0_36 = arith.constant 0 : index
    %c0_37 = arith.constant 0 : index
    %c0_38 = arith.constant 0 : index
    %38 = vector.load %arg6[%c0_35, %c0_36, %c0_37, %c0_38] : memref<1x8x8x128xf32, #tpu.memory_space<vmem>>, vector<1x8x8x128xf32>
    %39 = vector.shape_cast %38 : vector<1x8x8x128xf32> to vector<8x8x128xf32>
    %40 = vector.shape_cast %37 : vector<8x8x128xf32> to vector<1x8x8x128xf32>
    tpu.vector_store %arg6[%c0_35, %c0_36, %c0_37, %c0_38], %40 {strides = array<i32>} : memref<1x8x8x128xf32, #tpu.memory_space<vmem>>, vector<1x8x8x128xf32>,
    return
  }
  func.func @transform_0(%arg0: i32, %arg1: i32) -> (i32, i32, i32, i32) {
    %c0_i32 = arith.constant 0 : i32
    %c0_i32_0 = arith.constant 0 : i32
    %c0_i32_1 = arith.constant 0 : i32
    return %arg0, %arg1, %c0_i32, %c0_i32_0 : i32, i32, i32, i32
  }
  func.func @transform_1(%arg0: i32, %arg1: i32) -> (i32, i32, i32, i32) {
    %c1_i32 = arith.constant 1 : i32
    %0 = arith.addi %arg1, %c1_i32 : i32
    %c1_i32_0 = arith.constant 1 : i32
    %1 = arith.muli %0, %c1_i32_0 : i32
    %c0_i32 = arith.constant 0 : i32
    %c0_i32_1 = arith.constant 0 : i32
    %c0_i32_2 = arith.constant 0 : i32
    return %arg0, %1, %c0_i32, %c0_i32_1 : i32, i32, i32, i32
  }
  func.func @transform_2(%arg0: i32, %arg1: i32) -> (i32, i32, i32) {
    %c0_i32 = arith.constant 0 : i32
    %c0_i32_0 = arith.constant 0 : i32
    %c0_i32_1 = arith.constant 0 : i32
    %c0_i32_2 = arith.constant 0 : i32
    return %c0_i32, %c0_i32_0, %c0_i32_1 : i32, i32, i32
  }
  func.func @transform_3(%arg0: i32, %arg1: i32) -> (i32, i32) {
    %c0_i32 = arith.constant 0 : i32
    %c0_i32_0 = arith.constant 0 : i32
    %c0_i32_1 = arith.constant 0 : i32
    return %c0_i32, %c0_i32_0 : i32, i32
  }
  func.func @transform_4(%arg0: i32, %arg1: i32) -> (i32, i32, i32, i32) {
    %c0_i32 = arith.constant 0 : i32
    %c0_i32_0 = arith.constant 0 : i32
    %c0_i32_1 = arith.constant 0 : i32
    return %arg0, %arg1, %c0_i32, %c0_i32_0 : i32, i32, i32, i32
  }
}

</mosaic_0001>

<llo_original>
// kernel: gate_conv2d.1
$region0: #{gate_conv2d.1}
  #allocation0 [shape = 'u32[]', space=smem, size = 0x4, offset = 0x4, fixed_abs, tag = 'smem constant byte address 0x4 - core index']
  #allocation1 [shape = 'u32[144,128]{1,0:T(1,128)}', space=vmem, size = 0x12000, scoped, tag = 'internal scratch']
  #allocation2 [shape = 'f32[64,256]{1,0:T(8,128)}', space=vmem, size = 0x10000, scoped, tag = 'scratch operand']
  %s0 = inlined_call_operand.vmem [shape: f32[2,16,8,12], index: 0, kind: input, shape index: {}, may-alias: {0,1}]
  %s1 = inlined_call_operand.vmem [shape: f32[2,16,8,12], index: 1, kind: input, shape index: {}, may-alias: {0,1}]
  %s2 = inlined_call_operand.vmem [shape: f32[2,12,256], index: 2, kind: input, shape index: {}]
  %s3 = inlined_call_operand.vmem [shape: f32[1,256], index: 3, kind: input, shape index: {}]
  %s4 = inlined_call_operand.vmem [shape: f32[2,8,8,128], index: 4, kind: output, shape index: {}]
  %s5 = sld [smem:[#allocation0]]
  $region49: #{gate_conv2d.1} parent=0
    _
  %s7 = ssub.s32 1, %s5
  %s8 = scalar_select 0, %s7, %s5
  loop: start=0, step=1, limit=4
  $region2: #{gate_conv2d.1} parent=0 // loop_pre_header
    _
  $region3: #{gate_conv2d.1} parent=0 // loop_header
    %s10 = sphi 0, %s14
    %p11 = scmp.ge.s32.totalorder %s10, 4
    %s17 = sphi 0, %s29
    %s18 = sphi 0, %s25
    %s19 = sphi 0, %s17
    %s20 = sphi 0, %s18
    %s21 = sphi 0, %s19
    %s22 = sphi 0, %s20
    %s34 = sphi 0, %s36
    %s37 = sphi 0, %s34
    %s38 = sphi 0, %s37
    %s54 = sphi 0, %s38
    %s64 = sphi 0, %s66
    %s67 = sphi 0, %s64
    %s68 = sphi 0, %s67
    %s84 = sphi 0, %s68
    %s88 = sphi 0, %s88
    %s90 = sphi 0, %s88
    %s91 = sphi 0, %s90
    %s105 = sphi 0, %s91
    %s109 = sphi 0, %s109
    %s111 = sphi 0, %s109
    %s112 = sphi 0, %s111
    %s126 = sphi 0, %s112
    %s134 = sphi 0, %s136
    %s137 = sphi 0, %s134
    %s138 = sphi 0, %s137
    %s154 = sphi 0, %s138
  $region4: #{gate_conv2d.1} parent=0 // loop_header_branch
    %13 = sbr.rel (%p11) target = $region8
  $region5: #{gate_conv2d.1} parent=0 // loop_body
    %s15 = ssub.s32 %s10, 1
    %s16 = ssub.s32 %s10, 2
    %s23 = sadd.s32 1, %s18
    %p24 = scmp.ge.s32.totalorder %s23, 1
    %s25 = scalar_select %p24, 0, %s23
    %s26 = sadd.s32 1, %s17
    %s27 = scalar_select %p24, %s26, %s17
    %p28 = scmp.ge.s32.totalorder %s27, 2
    %s29 = scalar_select %p28, 0, %s27
    %s30 = ssub.s32 %s17, %s29
    %s31 = ssub.s32 %s18, %s25
    %s32 = sor.u32 %s30, %s31
    %p33 = scmp.eq.s32.totalorder %s32, 0
    %s35 = sadd.s32 %s34, 1
    %s36 = scalar_select %p33, %s34, %s35
    %p39 = pneg %p33
    %p40 = scmp.eq.s32.totalorder %s10, 1
    %p41 = por %p39, %p40
    %p42 = scmp.ne.s32.totalorder %s34, %s37
    %p43 = scmp.eq.s32.totalorder %s10, 0
    %p44 = por %p42, %p43
    %p45 = scmp.ne.s32.totalorder %s34, %s37
    %p46 = scmp.eq.s32.totalorder %s15, 1
    %p47 = por %p45, %p46
    %p48 = scmp.ne.s32.totalorder %s37, %s38
    %p49 = scmp.eq.s32.totalorder %s15, 0
    %p50 = por %p48, %p49
    %p51 = scmp.ne.s32.totalorder %s37, %s38
    %p52 = scmp.eq.s32.totalorder %s16, 1
    %p53 = por %p51, %p52
    %p55 = scmp.ne.s32.totalorder %s38, %s54
    %p56 = scmp.eq.s32.totalorder %s16, 0
    %p57 = por %p55, %p56
    %s58 = sadd.s32 %s18, 1
    %s59 = sadd.s32 %s25, 1
    %s60 = ssub.s32 %s17, %s29
    %s61 = ssub.s32 %s58, %s59
    %s62 = sor.u32 %s60, %s61
    %p63 = scmp.eq.s32.totalorder %s62, 0
    %s65 = sadd.s32 %s64, 1
    %s66 = scalar_select %p63, %s64, %s65
    %p69 = pneg %p63
    %p70 = scmp.eq.s32.totalorder %s10, 1
    %p71 = por %p69, %p70
    %p72 = scmp.ne.s32.totalorder %s64, %s67
    %p73 = scmp.eq.s32.totalorder %s10, 0
    %p74 = por %p72, %p73
    %p75 = scmp.ne.s32.totalorder %s64, %s67
    %p76 = scmp.eq.s32.totalorder %s15, 1
    %p77 = por %p75, %p76
    %p78 = scmp.ne.s32.totalorder %s67, %s68
    %p79 = scmp.eq.s32.totalorder %s15, 0
    %p80 = por %p78, %p79
    %p81 = scmp.ne.s32.totalorder %s67, %s68
    %p82 = scmp.eq.s32.totalorder %s16, 1
    %p83 = por %p81, %p82
    %p85 = scmp.ne.s32.totalorder %s68, %s84
    %p86 = scmp.eq.s32.totalorder %s16, 0
    %p87 = por %p85, %p86
    %s89 = sadd.s32 %s88, 1
    %p92 = scmp.eq.s32.totalorder %s10, 1
    %p93 = scmp.ne.s32.totalorder %s88, %s90
    %p94 = scmp.eq.s32.totalorder %s10, 0
    %p95 = por %p93, %p94
    %p96 = scmp.ne.s32.totalorder %s88, %s90
    %p97 = scmp.eq.s32.totalorder %s15, 1
    %p98 = por %p96, %p97
    %p99 = scmp.ne.s32.totalorder %s90, %s91
    %p100 = scmp.eq.s32.totalorder %s15, 0
    %p101 = por %p99, %p100
    %p102 = scmp.ne.s32.totalorder %s90, %s91
    %p103 = scmp.eq.s32.totalorder %s16, 1
    %p104 = por %p102, %p103
    %p106 = scmp.ne.s32.totalorder %s91, %s105
    %p107 = scmp.eq.s32.totalorder %s16, 0
    %p108 = por %p106, %p107
    %s110 = sadd.s32 %s109, 1
    %p113 = scmp.eq.s32.totalorder %s10, 1
    %p114 = scmp.ne.s32.totalorder %s109, %s111
    %p115 = scmp.eq.s32.totalorder %s10, 0
    %p116 = por %p114, %p115
    %p117 = scmp.ne.s32.totalorder %s109, %s111
    %p118 = scmp.eq.s32.totalorder %s15, 1
    %p119 = por %p117, %p118
    %p120 = scmp.ne.s32.totalorder %s111, %s112
    %p121 = scmp.eq.s32.totalorder %s15, 0
    %p122 = por %p120, %p121
    %p123 = scmp.ne.s32.totalorder %s111, %s112
    %p124 = scmp.eq.s32.totalorder %s16, 1
    %p125 = por %p123, %p124
    %p127 = scmp.ne.s32.totalorder %s112, %s126
    %p128 = scmp.eq.s32.totalorder %s16, 0
    %p129 = por %p127, %p128
    %s130 = ssub.s32 %s17, %s29
    %s131 = ssub.s32 %s18, %s25
    %s132 = sor.u32 %s130, %s131
    %p133 = scmp.eq.s32.totalorder %s132, 0
    %s135 = sadd.s32 %s134, 1
    %s136 = scalar_select %p133, %s134, %s135
    %p139 = pneg %p133
    %p140 = scmp.eq.s32.totalorder %s10, 1
    %p141 = por %p139, %p140
    %p142 = scmp.ne.s32.totalorder %s134, %s137
    %p143 = scmp.eq.s32.totalorder %s10, 0
    %p144 = por %p142, %p143
    %p145 = scmp.ne.s32.totalorder %s134, %s137
    %p146 = scmp.eq.s32.totalorder %s15, 1
    %p147 = por %p145, %p146
    %p148 = scmp.ne.s32.totalorder %s137, %s138
    %p149 = scmp.eq.s32.totalorder %s15, 0
    %p150 = por %p148, %p149
    %p151 = scmp.ne.s32.totalorder %s137, %s138
    %p152 = scmp.eq.s32.totalorder %s16, 1
    %p153 = por %p151, %p152
    %p155 = scmp.ne.s32.totalorder %s138, %s154
    %p156 = scmp.eq.s32.totalorder %s16, 0
    %p157 = por %p155, %p156
    %p158 = scmp.le.s32.totalorder 1, %s10
    %p159 = scmp.lt.s32.totalorder %s10, 3
    %p160 = pnand %p158, %p159
    %p161 = pneg %p160
    // Predicated region
    $region9: #{gate_conv2d.1} parent=5 // pred_check
      _
    $region10: #{gate_conv2d.1} parent=5 // pred_check_branch
      %163 = sbr.rel (%p160) target = $region12
    $region11: #{gate_conv2d.1} parent=5 // pred_region
      %s164 = ssub.s32 %s10, 1
      // Predicated region
      $region13: #{gate_conv2d.1} parent=11 // pred_check
        %p165 = pneg %p101
      $region14: #{gate_conv2d.1} parent=11 // pred_check_branch
        %167 = sbr.rel (%p165) target = $region16
      $region15: #{gate_conv2d.1} parent=11 // pred_region
        _
      $region16: #{gate_conv2d.1} parent=11 // pred_fallthru
        _
      // Predicated region
      $region17: #{gate_conv2d.1} parent=11 // pred_check
        %p168 = pneg %p122
      $region18: #{gate_conv2d.1} parent=11 // pred_check_branch
        %170 = sbr.rel (%p168) target = $region20
      $region19: #{gate_conv2d.1} parent=11 // pred_region
        _
      $region20: #{gate_conv2d.1} parent=11 // pred_fallthru
        _
    $region12: #{gate_conv2d.1} parent=5 // pred_fallthru
      _
    %p171 = scmp.lt.s32.totalorder %s10, 2
    // Predicated region
    $region21: #{gate_conv2d.1} parent=5 // pred_check
      %p172 = pneg %p171
    $region22: #{gate_conv2d.1} parent=5 // pred_check_branch
      %174 = sbr.rel (%p172) target = $region24
    $region23: #{gate_conv2d.1} parent=5 // pred_region
      // Predicated region
      $region25: #{gate_conv2d.1} parent=23 // pred_check
        %p175 = pneg %p44
      $region26: #{gate_conv2d.1} parent=23 // pred_check_branch
        %177 = sbr.rel (%p175) target = $region28
      $region27: #{gate_conv2d.1} parent=23 // pred_region
        %s178 = smul.u32 8, %s18
        %p179 = scmp.lt.s32.totalorder %s17, 1
        %s180 = scalar_select %p179, %s17, 1
        %p181 = scmp.lt.s32.totalorder %s178, 15
        %s182 = scalar_select %p181, %s178, 15
        %s183 = smul.addr %s180, 16
        %s184 = sadd.s32 %s182, %s183
        %s185 = smul.addr %s184, 8
        %s186 = scalar_lea.vmem %s0, %s185
        %s187 = smul.u32 8, %s18
      $region28: #{gate_conv2d.1} parent=23 // pred_fallthru
        _
      // Predicated region
      $region29: #{gate_conv2d.1} parent=23 // pred_check
        %p188 = pneg %p74
      $region30: #{gate_conv2d.1} parent=23 // pred_check_branch
        %190 = sbr.rel (%p188) target = $region32
      $region31: #{gate_conv2d.1} parent=23 // pred_region
        %s191 = sadd.s32 %s18, 1
        %s192 = smul.u32 8, %s191
        %p193 = scmp.lt.s32.totalorder %s17, 1
        %s194 = scalar_select %p193, %s17, 1
        %p195 = scmp.lt.s32.totalorder %s192, 15
        %s196 = scalar_select %p195, %s192, 15
        %s197 = smul.addr %s194, 16
        %s198 = sadd.s32 %s196, %s197
        %s199 = smul.addr %s198, 8
        %s200 = scalar_lea.vmem %s1, %s199
        %s201 = sadd.s32 %s18, 1
        %s202 = smul.u32 8, %s201
      $region32: #{gate_conv2d.1} parent=23 // pred_fallthru
        _
    $region24: #{gate_conv2d.1} parent=5 // pred_fallthru
      _
    %p203 = scmp.le.s32.totalorder 1, %s10
    %p204 = scmp.lt.s32.totalorder %s10, 3
    %p205 = pnand %p203, %p204
    %p206 = pneg %p205
    // Predicated region
    $region33: #{gate_conv2d.1} parent=5 // pred_check
      _
    $region34: #{gate_conv2d.1} parent=5 // pred_check_branch
      %208 = sbr.rel (%p205) target = $region36
    $region35: #{gate_conv2d.1} parent=5 // pred_region
      %s209 = ssub.s32 %s10, 1
      %s210 = smul.u32 8, %s20
      %p211 = scmp.lt.s32.totalorder %s19, 1
      %s212 = scalar_select %p211, %s19, 1
      %p213 = scmp.lt.s32.totalorder %s210, 15
      %s214 = scalar_select %p213, %s210, 15
      %s215 = smul.addr %s212, 16
      %s216 = sadd.s32 %s214, %s215
      %s217 = smul.addr %s216, 8
      %s218 = scalar_lea.vmem %s0, %s217
      %p219 = pneg %p50
      %p220 = pneg %p47
      %s221 = sadd.s32 %s20, 1
      %s222 = smul.u32 8, %s221
      %p223 = scmp.lt.s32.totalorder %s19, 1
      %s224 = scalar_select %p223, %s19, 1
      %p225 = scmp.lt.s32.totalorder %s222, 15
      %s226 = scalar_select %p225, %s222, 15
      %s227 = smul.addr %s224, 16
      %s228 = sadd.s32 %s226, %s227
      %s229 = smul.addr %s228, 8
      %s230 = scalar_lea.vmem %s1, %s229
      %p231 = pneg %p80
      %p232 = pneg %p77
      %p233 = pneg %p101
      %p234 = pneg %p98
      %p235 = pneg %p122
      %p236 = pneg %p119
      %p237 = pneg %p150
      %p238 = pneg %p147
      %s239 = smul.u32 8, %s20
      %p240 = scmp.lt.s32.totalorder %s19, 1
      %s241 = scalar_select %p240, %s19, 1
      %p242 = scmp.lt.s32.totalorder %s239, 7
      %s243 = scalar_select %p242, %s239, 7
      %s244 = smul.addr %s241, 8
      %s245 = sadd.s32 %s243, %s244
      %s246 = smul.addr %s245, 8
      %s247 = scalar_lea.vmem %s4, %s246
      %s248 = smul.u32 8, %s20
      %p249 = scmp.lt.s32.totalorder %s19, 1
      %s250 = scalar_select %p249, %s19, 1
      %p251 = scmp.lt.s32.totalorder %s248, 15
      %s252 = scalar_select %p251, %s248, 15
      %s253 = smul.addr %s250, 16
      %s254 = sadd.s32 %s252, %s253
      %s255 = smul.addr %s254, 8
      %s256 = scalar_lea.vmem %s0, %s255
      %s257 = smul.u32 8, %s20
      %s258 = sadd.s32 %s20, 1
      %s259 = smul.u32 8, %s258
      %p260 = scmp.lt.s32.totalorder %s19, 1
      %s261 = scalar_select %p260, %s19, 1
      %p262 = scmp.lt.s32.totalorder %s259, 15
      %s263 = scalar_select %p262, %s259, 15
      %s264 = smul.addr %s261, 16
      %s265 = sadd.s32 %s263, %s264
      %s266 = smul.addr %s265, 8
      %s267 = scalar_lea.vmem %s1, %s266
      %s268 = sadd.s32 %s20, 1
      %s269 = smul.u32 8, %s268
      %s270 = smul.u32 8, %s20
      %p271 = scmp.lt.s32.totalorder %s19, 1
      %s272 = scalar_select %p271, %s19, 1
      %p273 = scmp.lt.s32.totalorder %s270, 7
      %s274 = scalar_select %p273, %s270, 7
      %s275 = smul.addr %s272, 8
      %s276 = sadd.s32 %s274, %s275
      %s277 = smul.addr %s276, 8
      %s278 = scalar_lea.vmem %s4, %s277
      %s279 = smul.u32 8, %s20
      %v280 = vld [vmem:[%s256] sm:$0xff]
      %v281 = vld [vmem:[%s256 + $0x8] sm:$0xff]
      %v282 = vld [vmem:[%s256 + $0x10] sm:$0xff]
      %v283 = vld [vmem:[%s256 + $0x18] sm:$0xff]
      %v284 = vld [vmem:[%s256 + $0x20] sm:$0xff]
      %v285 = vld [vmem:[%s256 + $0x28] sm:$0xff]
      %v286 = vld [vmem:[%s256 + $0x30] sm:$0xff]
      %v287 = vld [vmem:[%s256 + $0x38] sm:$0xff]
      %v288 = vld [vmem:[%s2] sm:$0xff]
      %v289 = vld [vmem:[%s2 + $0x8] sm:$0xff]
      %v290 = vld [vmem:[%s2 + $0x10] sm:$0xf]
      %v291 = vld [vmem:[%s2 + $0x18] sm:$0xf]
      %vm292 = vcmask 97280
      %v294 = vsel %vm292, %v280, 0
      %v297 = vsel %vm292, %v281, 0
      %v300 = vsel %vm292, %v282, 0
      %v303 = vsel %vm292, %v283, 0
      %v306 = vsel %vm292, %v284, 0
      %v309 = vsel %vm292, %v285, 0
      %v312 = vsel %vm292, %v286, 0
      %v315 = vsel %vm292, %v287, 0
      %vm317 = vcmask 1043456
      %v319 = vsel %vm317, %v290, 0
      %v322 = vsel %vm317, %v291, 0
      %324 = vmatprep.subr.mxu0 %v289
      %325 = vmatpush1.msra.mxu0 %v288
      %326 = vmatprep.subr.mxu0 %v322
      %327 = vmatpush1.msra.mxu0 %v319
      %328 = vmatprep.subr.mxu0 0.0
      %329 = vmatpush1.msra.mxu0 0.0
      %330 = vmatprep.subr.mxu0 0.0
      %331 = vmatpush1.msra.mxu0 0.0
      %332 = vmatprep.subr.mxu0 0.0
      %333 = vmatpush1.msra.mxu0 0.0
      %334 = vmatprep.subr.mxu0 0.0
      %335 = vmatpush1.msra.mxu0 0.0
      %336 = vmatprep.subr.mxu0 0.0
      %337 = vmatpush1.msra.mxu0 0.0
      %338 = vmatprep.subr.mxu0 0.0
      %339 = vmatpush1.msra.mxu0 0.0
      %340 = vmatprep.subr.mxu0 0.0
      %341 = vmatpush1.msra.mxu0 0.0
      %342 = vmatprep.subr.mxu0 0.0
      %343 = vmatpush1.msra.mxu0 0.0
      %344 = vmatprep.subr.mxu0 0.0
      %345 = vmatpush1.msra.mxu0 0.0
      %346 = vmatprep.subr.mxu0 0.0
      %347 = vmatpush1.msra.mxu0 0.0
      %348 = vmatprep.subr.mxu0 0.0
      %349 = vmatpush1.msra.mxu0 0.0
      %350 = vmatprep.subr.mxu0 0.0
      %351 = vmatpush1.msra.mxu0 0.0
      %352 = vmatprep.subr.mxu0 0.0
      %353 = vmatpush1.msra.mxu0 0.0
      %354 = vmatprep.subr.mxu0 0.0
      %355 = vmatpush1.msra.mxu0 0.0
      %356 = vmatprep.subr.mxu0 0.0
      %357 = vmatpush1.msra.mxu0 0.0
      %358 = vmatprep.subr.mxu0 0.0
      %359 = vmatpush1.msra.mxu0 0.0
      %360 = vmatprep.subr.mxu0 0.0
      %361 = vmatpush1.msra.mxu0 0.0
      %362 = vmatprep.subr.mxu0 0.0
      %363 = vmatpush1.msra.mxu0 0.0
      %364 = vmatprep.subr.mxu0 0.0
      %365 = vmatpush1.msra.mxu0 0.0
      %366 = vmatprep.subr.mxu0 0.0
      %367 = vmatpush1.msra.mxu0 0.0
      %368 = vmatprep.subr.mxu0 0.0
      %369 = vmatpush1.msra.mxu0 0.0
      %370 = vmatprep.subr.mxu0 0.0
      %371 = vmatpush1.msra.mxu0 0.0
      %372 = vmatprep.subr.mxu0 0.0
      %373 = vmatpush1.msra.mxu0 0.0
      %374 = vmatprep.subr.mxu0 0.0
      %375 = vmatpush1.msra.mxu0 0.0
      %376 = vmatprep.subr.mxu0 0.0
      %377 = vmatpush1.msra.mxu0 0.0
      %378 = vmatprep.subr.mxu0 0.0
      %379 = vmatpush1.msra.mxu0 0.0
      %380 = vmatprep.subr.mxu0 0.0
      %381 = vmatpush1.msra.mxu0 0.0
      %382 = vmatprep.subr.mxu0 0.0
      %383 = vmatpush1.msra.mxu0 0.0
      %384 = vmatprep.subr.mxu0 0.0
      %385 = vmatpush1.msra.mxu0 0.0
      %386 = vmatprep.subr.mxu0 0.0
      %387 = vmatpush1.msra.mxu0 0.0
      %388 = vmatprep.mubr.f32.mxu0 0.0
      %389 = vmatmul.mubr.f32.gmra.mrb[0].mxu0 %v294
      %v390 = vpop.f32.mrb[0].mxu0
      %v391 = vadd.f32 0.0, %v390
      %v392 = vpop.f32.mrb[0].mxu0
      %v393 = vadd.f32 0.0, %v392
      %394 = vmatprep.mubr.f32.mxu0 0.0
      %395 = vmatmul.mubr.f32.gmra.mrb[0].mxu0 %v297
      %v396 = vpop.f32.mrb[0].mxu0
      %v397 = vadd.f32 0.0, %v396
      %v398 = vpop.f32.mrb[0].mxu0
      %v399 = vadd.f32 0.0, %v398
      %400 = vmatprep.mubr.f32.mxu0 0.0
      %401 = vmatmul.mubr.f32.gmra.mrb[0].mxu0 %v300
      %v402 = vpop.f32.mrb[0].mxu0
      %v403 = vadd.f32 0.0, %v402
      %v404 = vpop.f32.mrb[0].mxu0
      %v405 = vadd.f32 0.0, %v404
      %406 = vmatprep.mubr.f32.mxu0 0.0
      %407 = vmatmul.mubr.f32.gmra.mrb[0].mxu0 %v303
      %v408 = vpop.f32.mrb[0].mxu0
      %v409 = vadd.f32 0.0, %v408
      %v410 = vpop.f32.mrb[0].mxu0
      %v411 = vadd.f32 0.0, %v410
      %412 = vmatprep.mubr.f32.mxu0 0.0
      %413 = vmatmul.mubr.f32.gmra.mrb[0].mxu0 %v306
      %v414 = vpop.f32.mrb[0].mxu0
      %v415 = vadd.f32 0.0, %v414
      %v416 = vpop.f32.mrb[0].mxu0
      %v417 = vadd.f32 0.0, %v416
      %418 = vmatprep.mubr.f32.mxu0 0.0
      %419 = vmatmul.mubr.f32.gmra.mrb[0].mxu0 %v309
      %v420 = vpop.f32.mrb[0].mxu0
      %v421 = vadd.f32 0.0, %v420
      %v422 = vpop.f32.mrb[0].mxu0
      %v423 = vadd.f32 0.0, %v422
      %424 = vmatprep.mubr.f32.mxu0 0.0
      %425 = vmatmul.mubr.f32.gmra.mrb[0].mxu0 %v312
      %v426 = vpop.f32.mrb[0].mxu0
      %v427 = vadd.f32 0.0, %v426
      %v428 = vpop.f32.mrb[0].mxu0
      %v429 = vadd.f32 0.0, %v428
      %430 = vmatprep.mubr.f32.mxu0 0.0
      %431 = vmatmul.mubr.f32.gmra.mrb[0].mxu0 %v315
      %v432 = vpop.f32.mrb[0].mxu0
      %v433 = vadd.f32 0.0, %v432
      %v434 = vpop.f32.mrb[0].mxu0
      %v435 = vadd.f32 0.0, %v434
      %436 = vdwg.mxu0
      %437 = vst [vmem:[#allocation2] sm:$0xff] %v391
      %438 = vst [vmem:[#allocation2 + $0x8] sm:$0xff] %v393
      %439 = vst [vmem:[#allocation2 + $0x10] sm:$0xff] %v397
      %440 = vst [vmem:[#allocation2 + $0x18] sm:$0xff] %v399
      %441 = vst [vmem:[#allocation2 + $0x20] sm:$0xff] %v403
      %442 = vst [vmem:[#allocation2 + $0x28] sm:$0xff] %v405
      %443 = vst [vmem:[#allocation2 + $0x30] sm:$0xff] %v409
      %444 = vst [vmem:[#allocation2 + $0x38] sm:$0xff] %v411
      %445 = vst [vmem:[#allocation2 + $0x40] sm:$0xff] %v415
      %446 = vst [vmem:[#allocation2 + $0x48] sm:$0xff] %v417
      %447 = vst [vmem:[#allocation2 + $0x50] sm:$0xff] %v421
      %448 = vst [vmem:[#allocation2 + $0x58] sm:$0xff] %v423
      %449 = vst [vmem:[#allocation2 + $0x60] sm:$0xff] %v427
      %450 = vst [vmem:[#allocation2 + $0x68] sm:$0xff] %v429
      %451 = vst [vmem:[#allocation2 + $0x70] sm:$0xff] %v433
      %452 = vst [vmem:[#allocation2 + $0x78] sm:$0xff] %v435
      %s453 = scalar_lea.vmem %s256, 8
      %v454 = vld [vmem:[%s453] sm:$0xff]
      %v455 = vld [vmem:[%s453 + $0x8] sm:$0xff]
      %v456 = vld [vmem:[%s453 + $0x10] sm:$0xff]
      %v457 = vld [vmem:[%s453 + $0x18] sm:$0xff]
      %v458 = vld [vmem:[%s453 + $0x20] sm:$0xff]
      %v459 = vld [vmem:[%s453 + $0x28] sm:$0xff]
      %v460 = vld [vmem:[%s453 + $0x30] sm:$0xff]
      %s461 = scalar_lea.vmem %s2, 32
      %v462 = vld [vmem:[%s461] sm:$0xff]
      %v463 = vld [vmem:[%s461 + $0x8] sm:$0xff]
      %v464 = vld [vmem:[%s461 + $0x10] sm:$0xf]
      %v465 = vld [vmem:[%s461 + $0x18] sm:$0xf]
      %v467 = vsel %vm292, %v454, 0
      %v470 = vsel %vm292, %v455, 0
      %v473 = vsel %vm292, %v456, 0
      %v476 = vsel %vm292, %v457, 0
      %v479 = vsel %vm292, %v458, 0
      %v482 = vsel %vm292, %v459, 0
      %v485 = vsel %vm292, %v460, 0
      %v488 = vsel %vm317, %v464, 0
      %v491 = vsel %vm317, %v465, 0
      %493 = vmatprep.subr.mxu0 %v463
      %494 = vmatpush1.msra.mxu0 %v462
      %495 = vmatprep.subr.mxu0 %v491
      %496 = vmatpush1.msra.mxu0 %v488
      %497 = vmatprep.subr.mxu0 0.0
      %498 = vmatpush1.msra.mxu0 0.0
      %499 = vmatprep.subr.mxu0 0.0
      %500 = vmatpush1.msra.mxu0 0.0
      %501 = vmatprep.subr.mxu0 0.0
      %502 = vmatpush1.msra.mxu0 0.0
      %503 = vmatprep.subr.mxu0 0.0
      %504 = vmatpush1.msra.mxu0 0.0
      %505 = vmatprep.subr.mxu0 0.0
      %506 = vmatpush1.msra.mxu0 0.0
      %507 = vmatprep.subr.mxu0 0.0
      %508 = vmatpush1.msra.mxu0 0.0
      %509 = vmatprep.subr.mxu0 0.0
      %510 = vmatpush1.msra.mxu0 0.0
      %511 = vmatprep.subr.mxu0 0.0
      %512 = vmatpush1.msra.mxu0 0.0
      %513 = vmatprep.subr.mxu0 0.0
      %514 = vmatpush1.msra.mxu0 0.0
      %515 = vmatprep.subr.mxu0 0.0
      %516 = vmatpush1.msra.mxu0 0.0
      %517 = vmatprep.subr.mxu0 0.0
      %518 = vmatpush1.msra.mxu0 0.0
      %519 = vmatprep.subr.mxu0 0.0
      %520 = vmatpush1.msra.mxu0 0.0
      %521 = vmatprep.subr.mxu0 0.0
      %522 = vmatpush1.msra.mxu0 0.0
      %523 = vmatprep.subr.mxu0 0.0
      %524 = vmatpush1.msra.mxu0 0.0
      %525 = vmatprep.subr.mxu0 0.0
      %526 = vmatpush1.msra.mxu0 0.0
      %527 = vmatprep.subr.mxu0 0.0
      %528 = vmatpush1.msra.mxu0 0.0
      %529 = vmatprep.subr.mxu0 0.0
      %530 = vmatpush1.msra.mxu0 0.0
      %531 = vmatprep.subr.mxu0 0.0
      %532 = vmatpush1.msra.mxu0 0.0
      %533 = vmatprep.subr.mxu0 0.0
      %534 = vmatpush1.msra.mxu0 0.0
      %535 = vmatprep.subr.mxu0 0.0
      %536 = vmatpush1.msra.mxu0 0.0
      %537 = vmatprep.subr.mxu0 0.0
      %538 = vmatpush1.msra.mxu0 0.0
      %539 = vmatprep.subr.mxu0 0.0
      %540 = vmatpush1.msra.mxu0 0.0
      %541 = vmatprep.subr.mxu0 0.0
      %542 = vmatpush1.msra.mxu0 0.0
      %543 = vmatprep.subr.mxu0 0.0
      %544 = vmatpush1.msra.mxu0 0.0
      %545 = vmatprep.subr.mxu0 0.0
      %546 = vmatpush1.msra.mxu0 0.0
      %547 = vmatprep.subr.mxu0 0.0
      %548 = vmatpush1.msra.mxu0 0.0
      %549 = vmatprep.subr.mxu0 0.0
      %550 = vmatpush1.msra.mxu0 0.0
      %551 = vmatprep.subr.mxu0 0.0
      %552 = vmatpush1.msra.mxu0 0.0
      %553 = vmatprep.subr.mxu0 0.0
      %554 = vmatpush1.msra.mxu0 0.0
      %555 = vmatprep.subr.mxu0 0.0
      %556 = vmatpush1.msra.mxu0 0.0
      %557 = vmatprep.mubr.f32.mxu0 0.0
      %558 = vmatmul.mubr.f32.gmra.mrb[0].mxu0 %v467
      %v559 = vpop.f32.mrb[0].mxu0
      %v560 = vadd.f32 0.0, %v559
      %v561 = vpop.f32.mrb[0].mxu0
      %v562 = vadd.f32 0.0, %v561
      %563 = vmatprep.mubr.f32.mxu0 0.0
      %564 = vmatmul.mubr.f32.gmra.mrb[0].mxu0 %v470
      %v565 = vpop.f32.mrb[0].mxu0
      %v566 = vadd.f32 0.0, %v565
      %v567 = vpop.f32.mrb[0].mxu0
      %v568 = vadd.f32 0.0, %v567
      %569 = vmatprep.mubr.f32.mxu0 0.0
      %570 = vmatmul.mubr.f32.gmra.mrb[0].mxu0 %v473
      %v571 = vpop.f32.mrb[0].mxu0
      %v572 = vadd.f32 0.0, %v571
      %v573 = vpop.f32.mrb[0].mxu0
      %v574 = vadd.f32 0.0, %v573
      %575 = vmatprep.mubr.f32.mxu0 0.0
      %576 = vmatmul.mubr.f32.gmra.mrb[0].mxu0 %v476
      %v577 = vpop.f32.mrb[0].mxu0
      %v578 = vadd.f32 0.0, %v577
      %v579 = vpop.f32.mrb[0].mxu0
      %v580 = vadd.f32 0.0, %v579
      %581 = vmatprep.mubr.f32.mxu0 0.0
      %582 = vmatmul.mubr.f32.gmra.mrb[0].mxu0 %v479
      %v583 = vpop.f32.mrb[0].mxu0
      %v584 = vadd.f32 0.0, %v583
      %v585 = vpop.f32.mrb[0].mxu0
      %v586 = vadd.f32 0.0, %v585
      %587 = vmatprep.mubr.f32.mxu0 0.0
      %588 = vmatmul.mubr.f32.gmra.mrb[0].mxu0 %v482
      %v589 = vpop.f32.mrb[0].mxu0
      %v590 = vadd.f32 0.0, %v589
      %v591 = vpop.f32.mrb[0].mxu0
      %v592 = vadd.f32 0.0, %v591
      %593 = vmatprep.mubr.f32.mxu0 0.0
      %594 = vmatmul.mubr.f32.gmra.mrb[0].mxu0 %v485
      %v595 = vpop.f32.mrb[0].mxu0
      %v596 = vadd.f32 0.0, %v595
      %v597 = vpop.f32.mrb[0].mxu0
      %v598 = vadd.f32 0.0, %v597
      %599 = vdwg.mxu0
      %v600 = vld [vmem:[#allocation2] sm:$0xff]
      %v601 = vld [vmem:[#allocation2 + $0x8] sm:$0xff]
      %v602 = vld [vmem:[#allocation2 + $0x10] sm:$0xff]
      %v603 = vld [vmem:[#allocation2 + $0x18] sm:$0xff]
      %v604 = vld [vmem:[#allocation2 + $0x20] sm:$0xff]
      %v605 = vld [vmem:[#allocation2 + $0x28] sm:$0xff]
      %v606 = vld [vmem:[#allocation2 + $0x30] sm:$0xff]
      %v607 = vld [vmem:[#allocation2 + $0x38] sm:$0xff]
      %v608 = vld [vmem:[#allocation2 + $0x40] sm:$0xff]
      %v609 = vld [vmem:[#allocation2 + $0x48] sm:$0xff]
      %v610 = vld [vmem:[#allocation2 + $0x50] sm:$0xff]
      %v611 = vld [vmem:[#allocation2 + $0x58] sm:$0xff]
      %v612 = vld [vmem:[#allocation2 + $0x60] sm:$0xff]
      %v613 = vld [vmem:[#allocation2 + $0x68] sm:$0xff]
      %v614 = vadd.f32 %v600, %v560
      %v615 = vadd.f32 %v601, %v562
      %v616 = vadd.f32 %v602, %v566
      %v617 = vadd.f32 %v603, %v568
      %v618 = vadd.f32 %v604, %v572
      %v619 = vadd.f32 %v605, %v574
      %v620 = vadd.f32 %v606, %v578
      %v621 = vadd.f32 %v607, %v580
      %v622 = vadd.f32 %v608, %v584
      %v623 = vadd.f32 %v609, %v586
      %v624 = vadd.f32 %v610, %v590
      %v625 = vadd.f32 %v611, %v592
      %v626 = vadd.f32 %v612, %v596
      %v627 = vadd.f32 %v613, %v598
      %628 = vst [vmem:[#allocation2] sm:$0xff] %v614
      %629 = vst [vmem:[#allocation2 + $0x8] sm:$0xff] %v615
      %630 = vst [vmem:[#allocation2 + $0x10] sm:$0xff] %v616
      %631 = vst [vmem:[#allocation2 + $0x18] sm:$0xff] %v617
      %632 = vst [vmem:[#allocation2 + $0x20] sm:$0xff] %v618
      %633 = vst [vmem:[#allocation2 + $0x28] sm:$0xff] %v619
      %634 = vst [vmem:[#allocation2 + $0x30] sm:$0xff] %v620
      %635 = vst [vmem:[#allocation2 + $0x38] sm:$0xff] %v621
      %636 = vst [vmem:[#allocation2 + $0x40] sm:$0xff] %v622
      %637 = vst [vmem:[#allocation2 + $0x48] sm:$0xff] %v623
      %638 = vst [vmem:[#allocation2 + $0x50] sm:$0xff] %v624
      %639 = vst [vmem:[#allocation2 + $0x58] sm:$0xff] %v625
      %640 = vst [vmem:[#allocation2 + $0x60] sm:$0xff] %v626
      %641 = vst [vmem:[#allocation2 + $0x68] sm:$0xff] %v627
      %v642 = vld [vmem:[%s267] sm:$0xff]
      %v643 = vld [vmem:[#allocation2 + $0x70] sm:$0xff]
      %v644 = vld [vmem:[#allocation2 + $0x78] sm:$0xff]
      %v645 = vld [vmem:[%s461] sm:$0xff]
      %v646 = vld [vmem:[%s461 + $0x8] sm:$0xff]
      %v647 = vld [vmem:[%s461 + $0x10] sm:$0xf]
      %v648 = vld [vmem:[%s461 + $0x18] sm:$0xf]
      %v650 = vsel %vm292, %v642, 0
      %v653 = vsel %vm317, %v647, 0
      %v656 = vsel %vm317, %v648, 0
      %658 = vmatprep.subr.mxu0 %v646
      %659 = vmatpush1.msra.mxu0 %v645
      %660 = vmatprep.subr.mxu0 %v656
      %661 = vmatpush1.msra.mxu0 %v653
      %662 = vmatprep.subr.mxu0 0.0
      %663 = vmatpush1.msra.mxu0 0.0
      %664 = vmatprep.subr.mxu0 0.0
      %665 = vmatpush1.msra.mxu0 0.0
      %666 = vmatprep.subr.mxu0 0.0
      %667 = vmatpush1.msra.mxu0 0.0
      %668 = vmatprep.subr.mxu0 0.0
      %669 = vmatpush1.msra.mxu0 0.0
      %670 = vmatprep.subr.mxu0 0.0
      %671 = vmatpush1.msra.mxu0 0.0
      %672 = vmatprep.subr.mxu0 0.0
      %673 = vmatpush1.msra.mxu0 0.0
      %674 = vmatprep.subr.mxu0 0.0
      %675 = vmatpush1.msra.mxu0 0.0
      %676 = vmatprep.subr.mxu0 0.0
      %677 = vmatpush1.msra.mxu0 0.0
      %678 = vmatprep.subr.mxu0 0.0
      %679 = vmatpush1.msra.mxu0 0.0
      %680 = vmatprep.subr.mxu0 0.0
      %681 = vmatpush1.msra.mxu0 0.0
      %682 = vmatprep.subr.mxu0 0.0
      %683 = vmatpush1.msra.mxu0 0.0
      %684 = vmatprep.subr.mxu0 0.0
      %685 = vmatpush1.msra.mxu0 0.0
      %686 = vmatprep.subr.mxu0 0.0
      %687 = vmatpush1.msra.mxu0 0.0
      %688 = vmatprep.subr.mxu0 0.0
      %689 = vmatpush1.msra.mxu0 0.0
      %690 = vmatprep.subr.mxu0 0.0
      %691 = vmatpush1.msra.mxu0 0.0
      %692 = vmatprep.subr.mxu0 0.0
      %693 = vmatpush1.msra.mxu0 0.0
      %694 = vmatprep.subr.mxu0 0.0
      %695 = vmatpush1.msra.mxu0 0.0
      %696 = vmatprep.subr.mxu0 0.0
      %697 = vmatpush1.msra.mxu0 0.0
      %698 = vmatprep.subr.mxu0 0.0
      %699 = vmatpush1.msra.mxu0 0.0
      %700 = vmatprep.subr.mxu0 0.0
      %701 = vmatpush1.msra.mxu0 0.0
      %702 = vmatprep.subr.mxu0 0.0
      %703 = vmatpush1.msra.mxu0 0.0
      %704 = vmatprep.subr.mxu0 0.0
      %705 = vmatpush1.msra.mxu0 0.0
      %706 = vmatprep.subr.mxu0 0.0
      %707 = vmatpush1.msra.mxu0 0.0
      %708 = vmatprep.subr.mxu0 0.0
      %709 = vmatpush1.msra.mxu0 0.0
      %710 = vmatprep.subr.mxu0 0.0
      %711 = vmatpush1.msra.mxu0 0.0
      %712 = vmatprep.subr.mxu0 0.0
      %713 = vmatpush1.msra.mxu0 0.0
      %714 = vmatprep.subr.mxu0 0.0
      %715 = vmatpush1.msra.mxu0 0.0
      %716 = vmatprep.subr.mxu0 0.0
      %717 = vmatpush1.msra.mxu0 0.0
      %718 = vmatprep.subr.mxu0 0.0
      %719 = vmatpush1.msra.mxu0 0.0
      %720 = vmatprep.subr.mxu0 0.0
      %721 = vmatpush1.msra.mxu0 0.0
      %722 = vmatprep.mubr.f32.mxu0 0.0
      %723 = vmatmul.mubr.f32.gmra.mrb[0].mxu0 %v650
      %v724 = vpop.f32.mrb[0].mxu0
      %v725 = vadd.f32 0.0, %v724
      %v726 = vpop.f32.mrb[0].mxu0
      %v727 = vadd.f32 0.0, %v726
      %728 = vdwg.mxu0
      %v729 = vadd.f32 %v643, %v725
      %v730 = vadd.f32 %v644, %v727
      %731 = vst [vmem:[#allocation2 + $0x70] sm:$0xff] %v729
      %732 = vst [vmem:[#allocation2 + $0x78] sm:$0xff] %v730
      %v733 = vld [vmem:[#allocation2] sm:$0xff]
      %v734 = vld [vmem:[#allocation2 + $0x8] sm:$0xff]
      %v735 = vld [vmem:[#allocation2 + $0x10] sm:$0xff]
      %v736 = vld [vmem:[#allocation2 + $0x18] sm:$0xff]
      %v737 = vld [vmem:[#allocation2 + $0x20] sm:$0xff]
      %v738 = vld [vmem:[#allocation2 + $0x28] sm:$0xff]
      %v739 = vld [vmem:[#allocation2 + $0x30] sm:$0xff]
      %v740 = vld [vmem:[#allocation2 + $0x38] sm:$0xff]
      %v741 = vld [vmem:[#allocation2 + $0x40] sm:$0xff]
      %v742 = vld [vmem:[#allocation2 + $0x48] sm:$0xff]
      %v743 = vld [vmem:[#allocation2 + $0x50] sm:$0xff]
      %v744 = vld [vmem:[#allocation2 + $0x58] sm:$0xff]
      %v745 = vld [vmem:[#allocation2 + $0x60] sm:$0xff]
      %v746 = vld [vmem:[#allocation2 + $0x68] sm:$0xff]
      %v747 = vld [vmem:[#allocation2 + $0x70] sm:$0xff]
      %v748 = vld [vmem:[#allocation2 + $0x78] sm:$0xff]
      %v749 = vld [vmem:[%s3] sm:$0x3]
      %v751 = vlaneseq
      %v752 = vshrl.u32 %v751, 7
      %v753 = vsub.s32 0, %v752
      %v754 = vrot.slane %v749, %v753
      %v755 = vlaneseq
      %v756 = vshrl.u32 %v755, 7
      %v757 = vsub.s32 1, %v756
      %v758 = vrot.slane %v749, %v757
      %v761 = vadd.f32 %v733, %v754
      %v762 = vadd.f32 %v734, %v758
      %v763 = vadd.f32 %v735, %v754
      %v764 = vadd.f32 %v736, %v758
      %v765 = vadd.f32 %v737, %v754
      %v766 = vadd.f32 %v738, %v758
      %v767 = vadd.f32 %v739, %v754
      %v768 = vadd.f32 %v740, %v758
      %v769 = vadd.f32 %v741, %v754
      %v770 = vadd.f32 %v742, %v758
      %v771 = vadd.f32 %v743, %v754
      %v772 = vadd.f32 %v744, %v758
      %v773 = vadd.f32 %v745, %v754
      %v774 = vadd.f32 %v746, %v758
      %v775 = vadd.f32 %v747, %v754
      %v776 = vadd.f32 %v748, %v758
      %v777 = vxor.u32 %v762, 2147483648
      %v778 = vxor.u32 %v764, 2147483648
      %v779 = vxor.u32 %v766, 2147483648
      %v780 = vxor.u32 %v768, 2147483648
      %v781 = vxor.u32 %v770, 2147483648
      %v782 = vxor.u32 %v772, 2147483648
      %v783 = vxor.u32 %v774, 2147483648
      %v784 = vxor.u32 %v776, 2147483648
      %v785 = vmul.f32 %v777, 1.442695
      %v786 = vpow.pop %v785
      %v787 = vmul.f32 %v778, 1.442695
      %v788 = vpow.pop %v787
      %v789 = vmul.f32 %v779, 1.442695
      %v790 = vpow.pop %v789
      %v791 = vmul.f32 %v780, 1.442695
      %v792 = vpow.pop %v791
      %v793 = vmul.f32 %v781, 1.442695
      %v794 = vpow.pop %v793
      %v795 = vmul.f32 %v782, 1.442695
      %v796 = vpow.pop %v795
      %v797 = vmul.f32 %v783, 1.442695
      %v798 = vpow.pop %v797
      %v799 = vmul.f32 %v784, 1.442695
      %v800 = vpow.pop %v799
      %v801 = vadd.f32 %v786, 1.0
      %v802 = vadd.f32 %v788, 1.0
      %v803 = vadd.f32 %v790, 1.0
      %v804 = vadd.f32 %v792, 1.0
      %v805 = vadd.f32 %v794, 1.0
      %v806 = vadd.f32 %v796, 1.0
      %v807 = vadd.f32 %v798, 1.0
      %v808 = vadd.f32 %v800, 1.0
      %v809 = vrcp.pop %v801
      %v810 = vmul.f32 1.0, %v809
      %v811 = vrcp.pop %v802
      %v812 = vmul.f32 1.0, %v811
      %v813 = vrcp.pop %v803
      %v814 = vmul.f32 1.0, %v813
      %v815 = vrcp.pop %v804
      %v816 = vmul.f32 1.0, %v815
      %v817 = vrcp.pop %v805
      %v818 = vmul.f32 1.0, %v817
      %v819 = vrcp.pop %v806
      %v820 = vmul.f32 1.0, %v819
      %v821 = vrcp.pop %v807
      %v822 = vmul.f32 1.0, %v821
      %v823 = vrcp.pop %v808
      %v824 = vmul.f32 1.0, %v823
      %v825 = vmul.f32 %v761, %v810
      %v826 = vmul.f32 %v763, %v812
      %v827 = vmul.f32 %v765, %v814
      %v828 = vmul.f32 %v767, %v816
      %v829 = vmul.f32 %v769, %v818
      %v830 = vmul.f32 %v771, %v820
      %v831 = vmul.f32 %v773, %v822
      %v832 = vmul.f32 %v775, %v824
      %833 = vst [vmem:[%s278] sm:$0xff] %v825
      %834 = vst [vmem:[%s278 + $0x8] sm:$0xff] %v826
      %835 = vst [vmem:[%s278 + $0x10] sm:$0xff] %v827
      %836 = vst [vmem:[%s278 + $0x18] sm:$0xff] %v828
      %837 = vst [vmem:[%s278 + $0x20] sm:$0xff] %v829
      %838 = vst [vmem:[%s278 + $0x28] sm:$0xff] %v830
      %839 = vst [vmem:[%s278 + $0x30] sm:$0xff] %v831
      %840 = vst [vmem:[%s278 + $0x38] sm:$0xff] %v832
      %s841 = smul.u32 8, %s20
      %p842 = scmp.lt.s32.totalorder %s19, 1
      %s843 = scalar_select %p842, %s19, 1
      %p844 = scmp.lt.s32.totalorder %s841, 7
      %s845 = scalar_select %p844, %s841, 7
      %s846 = smul.addr %s843, 8
      %s847 = sadd.s32 %s845, %s846
      %s848 = smul.addr %s847, 8
      %s849 = scalar_lea.vmem %s4, %s848
      // Predicated region
      $region37: #{gate_conv2d.1} parent=35 // pred_check
        %p850 = pneg %p147
      $region38: #{gate_conv2d.1} parent=35 // pred_check_branch
        %852 = sbr.rel (%p850) target = $region40
      $region39: #{gate_conv2d.1} parent=35 // pred_region
        %s853 = smul.u32 8, %s20
      $region40: #{gate_conv2d.1} parent=35 // pred_fallthru
        _
    $region36: #{gate_conv2d.1} parent=5 // pred_fallthru
      _
    %p854 = scmp.le.s32.totalorder 2, %s10
    // Predicated region
    $region41: #{gate_conv2d.1} parent=5 // pred_check
      %p855 = pneg %p854
    $region42: #{gate_conv2d.1} parent=5 // pred_check_branch
      %857 = sbr.rel (%p855) target = $region44
    $region43: #{gate_conv2d.1} parent=5 // pred_region
      %s858 = ssub.s32 %s10, 2
      // Predicated region
      $region45: #{gate_conv2d.1} parent=43 // pred_check
        %p859 = pneg %p153
      $region46: #{gate_conv2d.1} parent=43 // pred_check_branch
        %861 = sbr.rel (%p859) target = $region48
      $region47: #{gate_conv2d.1} parent=43 // pred_region
        %s862 = smul.u32 8, %s22
        %p863 = scmp.lt.s32.totalorder %s21, 1
        %s864 = scalar_select %p863, %s21, 1
        %p865 = scmp.lt.s32.totalorder %s862, 7
        %s866 = scalar_select %p865, %s862, 7
        %s867 = smul.addr %s864, 8
        %s868 = sadd.s32 %s866, %s867
        %s869 = smul.addr %s868, 8
        %s870 = scalar_lea.vmem %s4, %s869
      $region48: #{gate_conv2d.1} parent=43 // pred_fallthru
        _
    $region44: #{gate_conv2d.1} parent=5 // pred_fallthru
      _
  $region6: #{gate_conv2d.1} parent=0 // loop_footer
    %s14 = sadd.s32 1, %s10
  $region7: #{gate_conv2d.1} parent=0 // loop_footer_branch
    %9 = sbr.rel target = $region3
  $region8: #{gate_conv2d.1} parent=0 // loop_exit
    _

</llo_original>
